<compile_context>
chip_gen: v5e
topology: v5e:2x2
jax: 0.10.0
libtpu: 0.0.40
codegen_flags: <defaults>
</compile_context>

<pallas_src>
import math

import jax
import jax.numpy as jnp
from jax.experimental import pallas as pl
from jax.experimental.pallas import tpu as pltpu

_LANE = 128
_TARGET_BLOCK_BYTES = 2 * 1024 * 1024  # ~2 MiB/block -> 4 bufs ~8 MiB VMEM


def _copy_kernel(x_ref, o_ref):
    # Identity copy: the whole "forward" of a view is a no-op on the data.
    o_ref[...] = x_ref[...]


def _resolve_shape(numel, shape):
    """Resolve a torch-style target shape (may contain a single -1)."""
    shape = tuple(int(s) for s in shape)
    if shape.count(-1) > 1:
        raise ValueError("only one dimension can be inferred")
    if -1 in shape:
        known = 1
        for s in shape:
            if s != -1:
                known *= s
        if known == 0 or numel % known != 0:
            raise ValueError(f"cannot view {numel} elements as {shape}")
        shape = tuple(numel // known if s == -1 else s for s in shape)
    if math.prod(shape) != numel:
        raise ValueError(f"shape {shape} is invalid for {numel} elements")
    return shape


def _plan_tiles(numel, itemsize):
    """Choose a lane-dense (rows_padded, cols) slab and a row-tiled grid."""
    # Sublane multiple per dtype width (f32: 8, bf16/f16: 16, int8/fp8: 32).
    sub = {4: 8, 2: 16, 1: 32}.get(itemsize, 8)
    cols = 1024 if numel >= 1024 else _LANE
    # Largest sublane-aligned row count that keeps one block <= ~2 MiB.
    max_block_rows = max(sub, (_TARGET_BLOCK_BYTES // (cols * itemsize)) // sub * sub)
    rows = pl.cdiv(numel, cols)
    rows_rounded = pl.cdiv(rows, sub) * sub
    block_rows = min(max_block_rows, rows_rounded)
    rows_padded = pl.cdiv(rows_rounded, block_rows) * block_rows
    grid = rows_padded // block_rows
    return rows_padded, cols, block_rows, grid


def _pallas_identity_copy(x_flat_1d, numel, itemsize):
    """Copy a flat element stream through VMEM with a tiled Pallas kernel."""
    rows_padded, cols, block_rows, grid = _plan_tiles(numel, itemsize)
    padded_numel = rows_padded * cols

    pad = padded_numel - numel
    if pad:
        x_flat_1d = jnp.pad(x_flat_1d, (0, pad))
    x_slab = jnp.reshape(x_flat_1d, (rows_padded, cols))

    y_slab = pl.pallas_call(
        _copy_kernel,
        out_shape=jax.ShapeDtypeStruct((rows_padded, cols), x_slab.dtype),
        grid=(grid,),
        in_specs=[pl.BlockSpec((block_rows, cols), lambda i: (i, 0))],
        out_specs=pl.BlockSpec((block_rows, cols), lambda i: (i, 0)),
        compiler_params=pltpu.CompilerParams(
            dimension_semantics=("parallel",),
        ),
        cost_estimate=pl.CostEstimate(
            flops=0,
            transcendentals=0,
            bytes_accessed=2 * padded_numel * itemsize,
        ),
    )(x_slab)

    y_flat = jnp.reshape(y_slab, (padded_numel,))
    if pad:
        y_flat = y_flat[:numel]
    return y_flat


class Reshape:
    """JAX/Pallas equivalent of the PyTorch Reshape module (x.view(shape))."""

    def __init__(self, *args):
        self.shape = args

    def __call__(self, x):
        numel = math.prod(x.shape)
        target = _resolve_shape(numel, self.shape)

        if numel == 0:
            # Nothing to copy; pure metadata.
            return jnp.reshape(x, target)

        itemsize = jnp.dtype(x.dtype).itemsize
        # Row-major flattening preserves torch .view() element ordering.
        x_flat = jnp.reshape(x, (numel,))
        y_flat = _pallas_identity_copy(x_flat, numel, itemsize)

        # Pure metadata: final view shape.
        return jnp.reshape(y_flat, target)


if __name__ == "__main__":
    key = jax.random.PRNGKey(0)
    # Small example consistent with AE/VAE usage: flatten a conv feature map
    # [N, C, H, W] = [2, 4, 16, 16] into [N, C*H*W] via Reshape(-1, 1024),
    # i.e. the typical encoder "flatten" step.
    x = jax.random.normal(key, (2, 4, 16, 16), dtype=jnp.float32)

    reshape_mod = Reshape(-1, 4 * 16 * 16)
    y = reshape_mod(x)
    y = jax.block_until_ready(y)

    # Correctness check against plain JAX reshape (same semantics as .view()
    # on a contiguous tensor).
    ref = jnp.reshape(x, (-1, 4 * 16 * 16))
    assert y.shape == (2, 1024), y.shape
    assert y.dtype == x.dtype
    assert bool(jnp.array_equal(y, ref))

    # Exercise the non-128-divisible fallback (padded slab path) at tiny size.
    x2 = jax.random.normal(key, (3, 5, 7), dtype=jnp.float32)
    y2 = Reshape(-1, 7)(x2)
    y2 = jax.block_until_ready(y2)
    assert y2.shape == (15, 7)
    assert bool(jnp.array_equal(y2, jnp.reshape(x2, (-1, 7))))

    print("KERNEL_OK")
</pallas_src>

<mosaic_0001>
module attributes {stable_mosaic.version = 11 : i64} {
  func.func @_copy_kernel(%arg0: i32, %arg1: memref<8x1024xf32, #tpu.memory_space<vmem>>, %arg2: memref<8x1024xf32, #tpu.memory_space<vmem>>) attributes {dimension_semantics = [#tpu.dimension_semantics<parallel>], iteration_bounds = array<i64: 1>, scalar_prefetch = 0 : i64, scratch_operands = 0 : i64, tpu.core_type = #tpu.core_type<tc>, window_params = [{transform_indices = @transform_0, window_bounds = array<i64: 8, 1024>}, {transform_indices = @transform_1, window_bounds = array<i64: 8, 1024>}]} {
    %c0 = arith.constant 0 : index
    %c0_0 = arith.constant 0 : index
    %0 = vector.load %arg1[%c0, %c0_0] : memref<8x1024xf32, #tpu.memory_space<vmem>>, vector<8x1024xf32>
    %c0_1 = arith.constant 0 : index
    %c0_2 = arith.constant 0 : index
    %1 = vector.load %arg2[%c0_1, %c0_2] : memref<8x1024xf32, #tpu.memory_space<vmem>>, vector<8x1024xf32>
    tpu.vector_store %arg2[%c0_1, %c0_2], %0 {strides = array<i32>} : memref<8x1024xf32, #tpu.memory_space<vmem>>, vector<8x1024xf32>,
    return
  }
  func.func @transform_0(%arg0: i32) -> (i32, i32) {
    %c0_i32 = arith.constant 0 : i32
    %c0_i32_0 = arith.constant 0 : i32
    return %arg0, %c0_i32 : i32, i32
  }
  func.func @transform_1(%arg0: i32) -> (i32, i32) {
    %c0_i32 = arith.constant 0 : i32
    %c0_i32_0 = arith.constant 0 : i32
    return %arg0, %c0_i32 : i32, i32
  }
}

</mosaic_0001>

<llo_original>
// kernel: tpu_custom_call.1
$region0: #{tpu_custom_call.1}
  #allocation0 [shape = 'u32[]', space=smem, size = 0x4, offset = 0x4, fixed_abs, tag = 'smem constant byte address 0x4 - core index']
  #allocation1 [shape = 'u32[72,128]{1,0:T(1,128)}', space=vmem, size = 0x9000, scoped, tag = 'internal scratch']
  %s0 = inlined_call_operand.hbm [shape: f32[8,1024], index: 0, kind: input, shape index: {}]
  %s1 = inlined_call_operand.hbm [shape: f32[8,1024], index: 1, kind: output, shape index: {}]
  %s2 = sld [smem:[#allocation0]]
  $region18: #{tpu_custom_call.1} parent=0
    _
  %s4 = ssub.s32 1, %s2
  %s5 = scalar_select 0, %s4, %s2
  $region1: #{tpu_custom_call.1} parent=0
    #allocation2 [shape = 'u8[32768]{0}', space=vmem, size = 0x8000, scoped, tag = 'input window, operand 0, single buffered']
    #allocation3 [shape = 's32[1]{0}', space=sflag, size = 0x4, scoped, tag = 'scoped memory for tpu_custom_call.1']
    #allocation4 [shape = 's32[1]{0}', space=sflag, size = 0x4, scoped, tag = 'scoped memory for tpu_custom_call.1']
    #allocation5 [shape = 'u8[32768]{0}', space=vmem, size = 0x8000, scoped, tag = 'output window, operand 0, single buffered']
    %6 = vsyncpa [#allocation3], 0
    %7 = vsyncpa [#allocation4], 0
    // Predicated region
    $region2: #{tpu_custom_call.1} parent=1 // pred_check
      _
    $region3: #{tpu_custom_call.1} parent=1 // pred_check_branch
      %9 = sbr.rel (0) target = $region5
    $region4: #{tpu_custom_call.1} parent=1 // pred_region
      %11 = vsyncadd [#allocation3], 0
      %s13 = sshll.u32 %s0, 4
      %s14 = int_to_ptr.hbm [resolvable:$true] %s13
      %s15 = sshll.u32 [#allocation2], 4
      %s16 = int_to_ptr.vmem [resolvable:$true] %s15
      %18 = dma.hbm_to_vmem [thread:$0]  %s14, 1024, %s16, [#allocation3]
    $region5: #{tpu_custom_call.1} parent=1 // pred_fallthru
      _
    // Predicated region
    $region6: #{tpu_custom_call.1} parent=1 // pred_check
      _
    $region7: #{tpu_custom_call.1} parent=1 // pred_check_branch
      %20 = sbr.rel (0) target = $region9
    $region8: #{tpu_custom_call.1} parent=1 // pred_region
      %22 = dma.done [#allocation3], 1024
    $region9: #{tpu_custom_call.1} parent=1 // pred_fallthru
      _
    %v23 = vld [vmem:[#allocation2] sm:$0xff]
    %v24 = vld [vmem:[#allocation2 + $0x8] sm:$0xff]
    %v25 = vld [vmem:[#allocation2 + $0x10] sm:$0xff]
    %v26 = vld [vmem:[#allocation2 + $0x18] sm:$0xff]
    %v27 = vld [vmem:[#allocation2 + $0x20] sm:$0xff]
    %v28 = vld [vmem:[#allocation2 + $0x28] sm:$0xff]
    %v29 = vld [vmem:[#allocation2 + $0x30] sm:$0xff]
    %v30 = vld [vmem:[#allocation2 + $0x38] sm:$0xff]
    %31 = vst [vmem:[#allocation5] sm:$0xff] %v23
    %32 = vst [vmem:[#allocation5 + $0x8] sm:$0xff] %v24
    %33 = vst [vmem:[#allocation5 + $0x10] sm:$0xff] %v25
    %34 = vst [vmem:[#allocation5 + $0x18] sm:$0xff] %v26
    %35 = vst [vmem:[#allocation5 + $0x20] sm:$0xff] %v27
    %36 = vst [vmem:[#allocation5 + $0x28] sm:$0xff] %v28
    %37 = vst [vmem:[#allocation5 + $0x30] sm:$0xff] %v29
    %38 = vst [vmem:[#allocation5 + $0x38] sm:$0xff] %v30
    // Predicated region
    $region10: #{tpu_custom_call.1} parent=1 // pred_check
      _
    $region11: #{tpu_custom_call.1} parent=1 // pred_check_branch
      %40 = sbr.rel (0) target = $region13
    $region12: #{tpu_custom_call.1} parent=1 // pred_region
      %42 = vsyncadd [#allocation4], 0
      %s44 = sshll.u32 [#allocation5], 4
      %s45 = int_to_ptr.vmem [resolvable:$true] %s44
      %s46 = sshll.u32 %s1, 4
      %s47 = int_to_ptr.hbm [resolvable:$true] %s46
      %49 = dma.vmem_to_hbm [thread:$0]  %s45, 1024, %s47, [#allocation4]
    $region13: #{tpu_custom_call.1} parent=1 // pred_fallthru
      _
    // Predicated region
    $region14: #{tpu_custom_call.1} parent=1 // pred_check
      _
    $region15: #{tpu_custom_call.1} parent=1 // pred_check_branch
      %51 = sbr.rel (0) target = $region17
    $region16: #{tpu_custom_call.1} parent=1 // pred_region
      %53 = dma.done [#allocation4], 1024
    $region17: #{tpu_custom_call.1} parent=1 // pred_fallthru
      _
    %54 = vsyncpa [#allocation3], 1
    %55 = vsyncpa [#allocation4], 1

</llo_original>
